<compile_context>
chip_gen: v7x
topology: tpu7x:2x2x1
jax: 0.10.0
libtpu: 0.0.40
codegen_flags: <defaults>
</compile_context>

<pallas_src>
import functools

import jax
import jax.numpy as jnp
from jax.experimental import pallas as pl
from jax.experimental.pallas import tpu as pltpu


def _kae_kernel(x_ref, w_ref, bias_ref, o_ref, *, order: int):
    # x_ref:    (tile_n, D)        VMEM
    # w_ref:    (order*D, O)       VMEM, rows grouped [x^1 block | x^2 block | ...]
    # bias_ref: (1, O)             VMEM, bias + sum_d coeffs[o, d, 0] (x^0 folded in)
    # o_ref:    (tile_n, O)        VMEM
    x = x_ref[...].astype(jnp.float32)  # powers in f32 (v5e VPU has no bf16 path)

    if order >= 1:
        parts = [x]
        xp = x
        for _ in range(order - 1):
            xp = xp * x
            parts.append(xp)
        x_poly = jnp.concatenate(parts, axis=-1)            # (tile_n, order*D)
        acc = jnp.dot(x_poly.astype(w_ref.dtype), w_ref[...],
                      preferred_element_type=jnp.float32)    # single MXU push
    else:
        acc = jnp.zeros((x.shape[0], o_ref.shape[1]), jnp.float32)

    acc = acc + bias_ref[...].astype(jnp.float32)            # (1, O) broadcasts
    o_ref[...] = acc.astype(o_ref.dtype)


def kae_layer(x, coeffs, bias, *, tile_n=1024, use_bf16=False):
    """Pallas KAELayer forward.

    x:      (..., input_dim) float32
    coeffs: (out_dim, input_dim, order+1) float32  (PyTorch param layout)
    bias:   (1, out_dim) float32 or None
    returns (..., out_dim) float32
    """
    out_dim, input_dim, order_p1 = coeffs.shape
    order = order_p1 - 1
    orig_shape = x.shape

    xf = jnp.reshape(x, (-1, input_dim)).astype(jnp.float32)
    n = xf.shape[0]

    # --- One-time parameter preprocessing (outside the kernel) ---------------
    # x^0 term contributes sum_d coeffs[o, d, 0] regardless of x -> fold into bias.
    const_term = jnp.sum(coeffs[:, :, 0].astype(jnp.float32), axis=1).reshape(1, out_dim)
    if bias is None:
        bias_eff = const_term
    else:
        bias_eff = bias.reshape(1, out_dim).astype(jnp.float32) + const_term

    mm_dtype = jnp.bfloat16 if use_bf16 else jnp.float32
    if order >= 1:
        # (O, D, P-1) -> (P-1, D, O) -> (order*D, O); row i*D + d = coeffs[o, d, i+1]
        w = jnp.transpose(coeffs[:, :, 1:], (2, 1, 0)).reshape(order * input_dim, out_dim)
    else:
        w = jnp.zeros((input_dim, out_dim), coeffs.dtype)  # unused dummy operand
    w = w.astype(mm_dtype)
    xf = xf.astype(mm_dtype) if use_bf16 else xf  # bf16 HBM reads only if requested

    # --- Tiling over the (independent) batch rows ----------------------------
    n8 = ((n + 7) // 8) * 8
    tile_n = max(8, min(int(tile_n), n8))
    tile_n = ((tile_n + 7) // 8) * 8           # keep a multiple of 8 sublanes
    n_pad = pl.cdiv(n, tile_n) * tile_n
    if n_pad != n:
        xf = jnp.pad(xf, ((0, n_pad - n), (0, 0)))

    grid = (n_pad // tile_n,)
    k_dim = w.shape[0]
    kernel = functools.partial(_kae_kernel, order=order)

    out = pl.pallas_call(
        kernel,
        out_shape=jax.ShapeDtypeStruct((n_pad, out_dim), jnp.float32),
        grid_spec=pltpu.PrefetchScalarGridSpec(
            num_scalar_prefetch=0,
            grid=grid,
            in_specs=[
                pl.BlockSpec((tile_n, input_dim), lambda i: (i, 0)),
                pl.BlockSpec((k_dim, out_dim), lambda i: (0, 0)),   # VMEM-resident
                pl.BlockSpec((1, out_dim), lambda i: (0, 0)),        # VMEM-resident
            ],
            out_specs=pl.BlockSpec((tile_n, out_dim), lambda i: (i, 0)),
        ),
        compiler_params=pltpu.CompilerParams(
            dimension_semantics=("parallel",)),
    )(xf, w, bias_eff)

    out = out[:n]
    return jnp.reshape(out, orig_shape[:-1] + (out_dim,))


def kae_reference(x, coeffs, bias):
    """Pure-JAX reference mirroring the PyTorch loop."""
    out_dim, input_dim, order_p1 = coeffs.shape
    shape = x.shape
    xf = jnp.reshape(x, (-1, input_dim)).astype(jnp.float32)
    y = jnp.zeros((xf.shape[0], out_dim), jnp.float32)
    for i in range(order_p1):
        xi = xf ** i                                        # (N, D); 0**0 == 1
        y = y + jnp.einsum("nd,od->no", xi, coeffs[:, :, i].astype(jnp.float32))
    if bias is not None:
        y = y + bias.reshape(1, out_dim)
    return jnp.reshape(y, shape[:-1] + (out_dim,))


if __name__ == "__main__":
    key = jax.random.PRNGKey(0)
    k_x, k_c, k_x2 = jax.random.split(key, 3)

    # Module config: input_dim=32, out_dim=16, order=3 (-> order+1 = 4 coeffs)
    input_dim, out_dim, order = 32, 16, 3

    coeffs = jax.random.normal(k_c, (out_dim, input_dim, order + 1), jnp.float32) * 0.01
    bias = jnp.zeros((1, out_dim), jnp.float32)

    # Test 1: small input with extra leading dims: (batch=2, seq=8, input_dim=32)
    x = jax.random.normal(k_x, (2, 8, input_dim), jnp.float32)
    y = jax.block_until_ready(kae_layer(x, coeffs, bias))
    y_ref = kae_reference(x, coeffs, bias)
    assert y.shape == (2, 8, out_dim), y.shape
    assert jnp.allclose(y, y_ref, atol=1e-5, rtol=1e-5), float(jnp.max(jnp.abs(y - y_ref)))

    # Test 2: larger batch exercising multiple grid steps (2 steps at tile_n=256).
    x2 = jax.random.normal(k_x2, (4, 128, input_dim), jnp.float32)
    y2 = jax.block_until_ready(kae_layer(x2, coeffs, bias, tile_n=256))
    y2_ref = kae_reference(x2, coeffs, bias)
    assert y2.shape == (4, 128, out_dim), y2.shape
    assert jnp.allclose(y2, y2_ref, atol=1e-5, rtol=1e-5), float(jnp.max(jnp.abs(y2 - y2_ref)))

    print("KERNEL_OK")
</pallas_src>

<mosaic_0001>
module attributes {stable_mosaic.version = 11 : i64} {
  func.func @_kae_kernel(%arg0: i32, %arg1: memref<16x32xf32, #tpu.memory_space<vmem>>, %arg2: memref<96x16xf32, #tpu.memory_space<vmem>>, %arg3: memref<1x16xf32, #tpu.memory_space<vmem>>, %arg4: memref<16x16xf32, #tpu.memory_space<vmem>>) attributes {dimension_semantics = [#tpu.dimension_semantics<parallel>], iteration_bounds = array<i64: 1>, scalar_prefetch = 0 : i64, scratch_operands = 0 : i64, tpu.core_type = #tpu.core_type<tc>, window_params = [{transform_indices = @transform_0, window_bounds = array<i64: 16, 32>}, {pipeline_mode = #tpu.pipeline_mode<synchronous>, transform_indices = @transform_1, window_bounds = array<i64: 96, 16>}, {pipeline_mode = #tpu.pipeline_mode<synchronous>, transform_indices = @transform_2, window_bounds = array<i64: 1, 16>}, {transform_indices = @transform_3, window_bounds = array<i64: 16, 16>}]} {
    %c0 = arith.constant 0 : index
    %c0_0 = arith.constant 0 : index
    %0 = vector.load %arg1[%c0, %c0_0] : memref<16x32xf32, #tpu.memory_space<vmem>>, vector<16x32xf32>
    %1 = arith.mulf %0, %0 : vector<16x32xf32>
    %2 = arith.mulf %1, %0 : vector<16x32xf32>
    %3 = tpu.concatenate %0, %1, %2 in 1 : vector<16x32xf32>, vector<16x32xf32>, vector<16x32xf32> -> vector<16x96xf32>
    %c0_1 = arith.constant 0 : index
    %c0_2 = arith.constant 0 : index
    %4 = vector.load %arg2[%c0_1, %c0_2] : memref<96x16xf32, #tpu.memory_space<vmem>>, vector<96x16xf32>
    %cst = arith.constant dense<0.000000e+00> : vector<16x16xf32>
    %5 = tpu.matmul %3, %4, %cst {dimension_numbers = #tpu.dot_dimension_numbers<[1], [0], [0], [1], [0, 0, 1, 1], [], []>} : vector<16x96xf32>, vector<96x16xf32>, vector<16x16xf32> -> vector<16x16xf32>
    %c0_3 = arith.constant 0 : index
    %c0_4 = arith.constant 0 : index
    %6 = vector.load %arg3[%c0_3, %c0_4] : memref<1x16xf32, #tpu.memory_space<vmem>>, vector<1x16xf32>
    %7 = vector.broadcast %6 : vector<1x16xf32> to vector<16x16xf32>
    %8 = arith.addf %5, %7 : vector<16x16xf32>
    %c0_5 = arith.constant 0 : index
    %c0_6 = arith.constant 0 : index
    %9 = vector.load %arg4[%c0_5, %c0_6] : memref<16x16xf32, #tpu.memory_space<vmem>>, vector<16x16xf32>
    tpu.vector_store %arg4[%c0_5, %c0_6], %8 {strides = array<i32>} : memref<16x16xf32, #tpu.memory_space<vmem>>, vector<16x16xf32>,
    return
  }
  func.func @transform_0(%arg0: i32) -> (i32, i32) {
    %c0_i32 = arith.constant 0 : i32
    %c0_i32_0 = arith.constant 0 : i32
    return %arg0, %c0_i32 : i32, i32
  }
  func.func @transform_1(%arg0: i32) -> (i32, i32) {
    %c0_i32 = arith.constant 0 : i32
    %c0_i32_0 = arith.constant 0 : i32
    %c0_i32_1 = arith.constant 0 : i32
    return %c0_i32, %c0_i32_0 : i32, i32
  }
  func.func @transform_2(%arg0: i32) -> (i32, i32) {
    %c0_i32 = arith.constant 0 : i32
    %c0_i32_0 = arith.constant 0 : i32
    %c0_i32_1 = arith.constant 0 : i32
    return %c0_i32, %c0_i32_0 : i32, i32
  }
  func.func @transform_3(%arg0: i32) -> (i32, i32) {
    %c0_i32 = arith.constant 0 : i32
    %c0_i32_0 = arith.constant 0 : i32
    return %arg0, %c0_i32 : i32, i32
  }
}

</mosaic_0001>

<llo_original>
// kernel: tpu_custom_call.1
$region0: #{tpu_custom_call.1}
  #allocation0 [shape = 'u32[]', space=smem, size = 0x4, offset = 0x4, fixed_abs, tag = 'smem constant byte address 0x4 - core index']
  #allocation1 [shape = 'u32[144,128]{1,0:T(1,128)}', space=vmem, size = 0x12000, scoped, tag = 'internal scratch']
  %s0 = inlined_call_operand.vmem [shape: f32[16,32], index: 0, kind: input, shape index: {}]
  %s1 = inlined_call_operand.vmem [shape: f32[96,16], index: 1, kind: input, shape index: {}]
  %s2 = inlined_call_operand.vmem [shape: f32[1,16], index: 2, kind: input, shape index: {}]
  %s3 = inlined_call_operand.hbm [shape: f32[16,16], index: 3, kind: output, shape index: {}]
  %s4 = sld [smem:[#allocation0]]
  $region22: #{tpu_custom_call.1} parent=0
    _
  %s6 = ssub.s32 1, %s4
  %s7 = scalar_select 0, %s6, %s4
  $region1: #{tpu_custom_call.1} parent=0
    #allocation2 [shape = 'u8[8192]{0}', space=vmem, size = 0x2000, scoped, tag = 'output window, operand 0, single buffered']
    #allocation3 [shape = 's32[1]{0}', space=sflag, size = 0x4, scoped, tag = 'scoped memory for tpu_custom_call.1']
    %8 = vsyncpa [#allocation3], 0
    // Predicated region
    $region2: #{tpu_custom_call.1} parent=1 // pred_check
      _
    $region3: #{tpu_custom_call.1} parent=1 // pred_check_branch
      %10 = sbr.rel (0) target = $region5
    $region4: #{tpu_custom_call.1} parent=1 // pred_region
      _
    $region5: #{tpu_custom_call.1} parent=1 // pred_fallthru
      _
    // Predicated region
    $region6: #{tpu_custom_call.1} parent=1 // pred_check
      _
    $region7: #{tpu_custom_call.1} parent=1 // pred_check_branch
      %12 = sbr.rel (0) target = $region9
    $region8: #{tpu_custom_call.1} parent=1 // pred_region
      _
    $region9: #{tpu_custom_call.1} parent=1 // pred_fallthru
      _
    // Predicated region
    $region10: #{tpu_custom_call.1} parent=1 // pred_check
      _
    $region11: #{tpu_custom_call.1} parent=1 // pred_check_branch
      %14 = sbr.rel (0) target = $region13
    $region12: #{tpu_custom_call.1} parent=1 // pred_region
      _
    $region13: #{tpu_custom_call.1} parent=1 // pred_fallthru
      _
    %v15 = vld [vmem:[%s0] sm:$0xff]
    %v16 = vld [vmem:[%s0 + $0x8] sm:$0xff]
    %v17 = vmul.f32 %v15, %v15
    %v18 = vmul.f32 %v16, %v16
    %v19 = vmul.f32 %v17, %v15
    %v20 = vmul.f32 %v18, %v16
    %23 = vrot.lane.b32.xlu0 %v17, 32
    %v24 = vpop.permute.xlu0 %23
    %25 = vrot.lane.b32.xlu0 %v18, 32
    %v26 = vpop.permute.xlu0 %25
    %31 = vrot.lane.b32.xlu0 %v19, 64
    %v32 = vpop.permute.xlu0 %31
    %33 = vrot.lane.b32.xlu0 %v20, 64
    %v34 = vpop.permute.xlu0 %33
    %vm37 = vcmask 261120
    %v38 = vsel %vm37, %v15, %v24
    %v39 = vsel %vm37, %v16, %v26
    %vm40 = vcmask 523264
    %v41 = vsel %vm40, %v38, %v32
    %v42 = vsel %vm40, %v39, %v34
    %v43 = vld [vmem:[%s1] sm:$0xff]
    %v44 = vld [vmem:[%s1 + $0x8] sm:$0xff]
    %v45 = vld [vmem:[%s1 + $0x10] sm:$0xff]
    %v46 = vld [vmem:[%s1 + $0x18] sm:$0xff]
    %v47 = vld [vmem:[%s1 + $0x20] sm:$0xff]
    %v48 = vld [vmem:[%s1 + $0x28] sm:$0xff]
    %v49 = vld [vmem:[%s1 + $0x30] sm:$0xff]
    %v50 = vld [vmem:[%s1 + $0x38] sm:$0xff]
    %v51 = vld [vmem:[%s1 + $0x40] sm:$0xff]
    %v52 = vld [vmem:[%s1 + $0x48] sm:$0xff]
    %v53 = vld [vmem:[%s1 + $0x50] sm:$0xff]
    %v54 = vld [vmem:[%s1 + $0x58] sm:$0xff]
    %v55 = vld [vmem:[%s2] sm:$0x1]
    %v57 = vlaneseq
    %v58 = vshrl.u32 %v57, 7
    %v59 = vsub.s32 0, %v58
    %v60 = vrot.slane %v55, %v59
    %vm62 = vcmask 785408
    %v64 = vsel %vm62, %v41, 0
    %v67 = vsel %vm62, %v42, 0
    %69 = vmatprep.subr.mxu0 0.0
    %70 = vmatpush1.msra.mxu0 %v43
    %71 = vmatprep.subr.mxu0 0.0
    %72 = vmatpush1.msra.mxu0 %v44
    %73 = vmatprep.subr.mxu0 0.0
    %74 = vmatpush1.msra.mxu0 %v45
    %75 = vmatprep.subr.mxu0 0.0
    %76 = vmatpush1.msra.mxu0 %v46
    %77 = vmatprep.subr.mxu0 0.0
    %78 = vmatpush1.msra.mxu0 %v47
    %79 = vmatprep.subr.mxu0 0.0
    %80 = vmatpush1.msra.mxu0 %v48
    %81 = vmatprep.subr.mxu0 0.0
    %82 = vmatpush1.msra.mxu0 %v49
    %83 = vmatprep.subr.mxu0 0.0
    %84 = vmatpush1.msra.mxu0 %v50
    %85 = vmatprep.subr.mxu0 0.0
    %86 = vmatpush1.msra.mxu0 %v51
    %87 = vmatprep.subr.mxu0 0.0
    %88 = vmatpush1.msra.mxu0 %v52
    %89 = vmatprep.subr.mxu0 0.0
    %90 = vmatpush1.msra.mxu0 %v53
    %91 = vmatprep.subr.mxu0 0.0
    %92 = vmatpush1.msra.mxu0 %v54
    %93 = vmatprep.subr.mxu0 0.0
    %94 = vmatpush1.msra.mxu0 0.0
    %95 = vmatprep.subr.mxu0 0.0
    %96 = vmatpush1.msra.mxu0 0.0
    %97 = vmatprep.subr.mxu0 0.0
    %98 = vmatpush1.msra.mxu0 0.0
    %99 = vmatprep.subr.mxu0 0.0
    %100 = vmatpush1.msra.mxu0 0.0
    %101 = vmatprep.subr.mxu0 0.0
    %102 = vmatpush1.msra.mxu0 0.0
    %103 = vmatprep.subr.mxu0 0.0
    %104 = vmatpush1.msra.mxu0 0.0
    %105 = vmatprep.subr.mxu0 0.0
    %106 = vmatpush1.msra.mxu0 0.0
    %107 = vmatprep.subr.mxu0 0.0
    %108 = vmatpush1.msra.mxu0 0.0
    %109 = vmatprep.subr.mxu0 0.0
    %110 = vmatpush1.msra.mxu0 0.0
    %111 = vmatprep.subr.mxu0 0.0
    %112 = vmatpush1.msra.mxu0 0.0
    %113 = vmatprep.subr.mxu0 0.0
    %114 = vmatpush1.msra.mxu0 0.0
    %115 = vmatprep.subr.mxu0 0.0
    %116 = vmatpush1.msra.mxu0 0.0
    %117 = vmatprep.subr.mxu0 0.0
    %118 = vmatpush1.msra.mxu0 0.0
    %119 = vmatprep.subr.mxu0 0.0
    %120 = vmatpush1.msra.mxu0 0.0
    %121 = vmatprep.subr.mxu0 0.0
    %122 = vmatpush1.msra.mxu0 0.0
    %123 = vmatprep.subr.mxu0 0.0
    %124 = vmatpush1.msra.mxu0 0.0
    %125 = vmatprep.subr.mxu0 0.0
    %126 = vmatpush1.msra.mxu0 0.0
    %127 = vmatprep.subr.mxu0 0.0
    %128 = vmatpush1.msra.mxu0 0.0
    %129 = vmatprep.subr.mxu0 0.0
    %130 = vmatpush1.msra.mxu0 0.0
    %131 = vmatprep.subr.mxu0 0.0
    %132 = vmatpush1.msra.mxu0 0.0
    %133 = vmatprep.mubr.f32.mxu0 0.0
    %134 = vmatmul.mubr.f32.gmra.mrb[0].mxu0 %v64
    %v135 = vpop.f32.mrb[0].mxu0
    %v136 = vadd.f32 %v60, %v135
    %v137 = vpop.f32.mrb[0].mxu0
    %138 = vmatprep.mubr.f32.mxu0 0.0
    %139 = vmatmul.mubr.f32.gmra.mrb[0].mxu0 %v67
    %v140 = vpop.f32.mrb[0].mxu0
    %v141 = vadd.f32 %v60, %v140
    %v142 = vpop.f32.mrb[0].mxu0
    %143 = vdwg.mxu0
    %vm144 = vcmask 130048
    %145 = vst.msk [vmem:[#allocation2] sm:$0xff] %vm144, %v136
    %146 = vst.msk [vmem:[#allocation2 + $0x8] sm:$0xff] %vm144, %v141
    // Predicated region
    $region14: #{tpu_custom_call.1} parent=1 // pred_check
      _
    $region15: #{tpu_custom_call.1} parent=1 // pred_check_branch
      %148 = sbr.rel (0) target = $region17
    $region16: #{tpu_custom_call.1} parent=1 // pred_region
      %s150 = ssub.s32 256, 256
      %151 = vsyncadd [#allocation3], %s150
      %s152 = sshll.u32 [#allocation2], 4
      %s153 = int_to_ptr.vmem [resolvable:$true] %s152
      %158 = dma.vmem_to_hbm [thread:$0]  %s153, 256, %s3, [#allocation3], 128, 128, 8
    $region17: #{tpu_custom_call.1} parent=1 // pred_fallthru
      _
    // Predicated region
    $region18: #{tpu_custom_call.1} parent=1 // pred_check
      _
    $region19: #{tpu_custom_call.1} parent=1 // pred_check_branch
      %160 = sbr.rel (0) target = $region21
    $region20: #{tpu_custom_call.1} parent=1 // pred_region
      %161 = dma.done [#allocation3], 256
    $region21: #{tpu_custom_call.1} parent=1 // pred_fallthru
      _
    %162 = vsyncpa [#allocation3], 1

</llo_original>
